<compile_context>
chip_gen: v7x
topology: tpu7x:2x2x1
jax: 0.10.0
libtpu: 0.0.40
codegen_flags: <defaults>
</compile_context>

<pallas_src>
import functools
import math

import jax
import jax.numpy as jnp
from jax.experimental import pallas as pl
from jax.experimental.pallas import tpu as pltpu

ALPHA = 1.0
GAMMA = 2.0
BETA = 0.5
SIZE_AVERAGE = True

_LANE = 128
_SUBLANE = 8
_MAX_TILE_ROWS = 4096  # 4096 rows x 128 lanes x 4 B = 2 MiB per input block


def _round_up(x, m):
    return ((x + m - 1) // m) * m


def _sublane_align(dtype):
    # native sublane tiling multiple: 4B -> 8, 2B -> 16, 1B -> 32
    return max(_SUBLANE, 32 // jnp.dtype(dtype).itemsize)


def _margin_ce_kernel(pred_ref, gt_ref, out_ref, *, n_valid, tile_rows,
                      needs_mask, coef, gamma, gt_is_bool):
    pred = pred_ref[...].astype(jnp.float32)
    # 1-EUP-op sigmoid: sigma(x) = 0.5 * tanh(0.5 * x) + 0.5
    prob = jnp.clip(0.5 * jnp.tanh(0.5 * pred) + 0.5, 0.0001, 0.9999)

    # torch: pt = cat([1-prob, prob], 1).gather(1, gt.long())
    # .long() truncates, so the positive class is selected iff gt >= 1.
    gt = gt_ref[...]
    is_pos = gt if gt_is_bool else (gt >= 1)
    pt = jnp.where(is_pos, prob, 1.0 - prob)

    # loss = -alpha * exp(gamma*(beta - pt^2)) * log(pt)
    #      = coef * exp(-gamma*pt^2) * log(pt),  coef = -alpha*exp(gamma*beta)
    loss = coef * jnp.exp(-gamma * pt * pt) * jnp.log(pt)

    def _partial_sum(x):
        # (tile_rows,128) -> (8,128) partial sums using plain VPU adds; the
        # single cross-lane reduce happens once, on a tiny array, outside.
        return jnp.sum(
            x.reshape(tile_rows // _SUBLANE, _SUBLANE, _LANE), axis=0)

    if not needs_mask:
        out_ref[...] = _partial_sum(loss)
    else:
        i = pl.program_id(0)
        last = pl.num_programs(0) - 1

        @pl.when(i < last)
        def _():  # interior steps: fully valid, no masking work at all
            out_ref[...] = _partial_sum(loss)

        @pl.when(i == last)
        def _():  # last step: zero padded / ragged-overhang garbage (>= n)
            base = i * (tile_rows * _LANE)
            row = jax.lax.broadcasted_iota(jnp.int32, (tile_rows, _LANE), 0)
            col = jax.lax.broadcasted_iota(jnp.int32, (tile_rows, _LANE), 1)
            flat_idx = base + row * _LANE + col
            out_ref[...] = _partial_sum(
                jnp.where(flat_idx < n_valid, loss, 0.0))


def margin_cross_entropy_with_logits(pred, gt, *, alpha=ALPHA, gamma=GAMMA,
                                     beta=BETA, size_average=SIZE_AVERAGE):
    """Forward pass of MarginCrossEntropyWithLogits.

    `gt` is streamed in its native dtype (float / int / bool) -- passing
    bool/int8 binary labels cuts HBM traffic vs float32; do NOT pre-cast.
    """
    pred_flat = jnp.reshape(pred, (-1,))
    gt_flat = jnp.reshape(gt, (-1,))
    n = pred_flat.shape[0]

    if n == 0:  # torch: mean of empty -> nan, sum of empty -> 0
        return jnp.float32(jnp.nan) if size_average else jnp.float32(0.0)

    if not jnp.issubdtype(pred_flat.dtype, jnp.floating):
        pred_flat = pred_flat.astype(jnp.float32)

    # View the flat stream as (rows, 128). Pad only when the element count is
    # ragged w.r.t. the native tile; padded / overhanging elements are masked
    # in-kernel on the last step only, so no mask stream is shipped to HBM.
    align = max(_sublane_align(pred_flat.dtype), _sublane_align(gt_flat.dtype))
    min_block = align * _LANE
    rem = n % min_block
    if rem:
        pad = min_block - rem
        pred_flat = jnp.pad(pred_flat, (0, pad))
        gt_flat = jnp.pad(gt_flat, (0, pad))

    rows = pred_flat.shape[0] // _LANE          # multiple of `align`
    # Biggest tile <= 2 MiB per input, but keep >= 2 grid steps whenever the
    # input allows it so the "parallel" axis can split across both v7x cores.
    if rows > align:
        tile_rows = min(_MAX_TILE_ROWS, _round_up(-(-rows // 2), align))
    else:
        tile_rows = rows
    num_steps = -(-rows // tile_rows)
    needs_mask = (num_steps * tile_rows * _LANE) != n

    pred2d = pred_flat.reshape(rows, _LANE)
    gt2d = gt_flat.reshape(rows, _LANE)

    coef = -float(alpha) * math.exp(float(gamma) * float(beta))
    kernel = functools.partial(
        _margin_ce_kernel, n_valid=n, tile_rows=tile_rows,
        needs_mask=needs_mask, coef=coef, gamma=float(gamma),
        gt_is_bool=(gt2d.dtype == jnp.bool_))

    in_bytes = (pred2d.size * jnp.dtype(pred2d.dtype).itemsize
                + gt2d.size * jnp.dtype(gt2d.dtype).itemsize)
    cost = pl.CostEstimate(
        flops=12 * n,
        transcendentals=3 * n,
        bytes_accessed=in_bytes + num_steps * _SUBLANE * _LANE * 4)

    partials = pl.pallas_call(
        kernel,
        out_shape=jax.ShapeDtypeStruct((num_steps * _SUBLANE, _LANE),
                                       jnp.float32),
        grid=(num_steps,),
        in_specs=[
            pl.BlockSpec((tile_rows, _LANE), lambda i: (i, 0)),
            pl.BlockSpec((tile_rows, _LANE), lambda i: (i, 0)),
        ],
        out_specs=pl.BlockSpec((_SUBLANE, _LANE), lambda i: (i, 0)),
        compiler_params=pltpu.CompilerParams(
            dimension_semantics=("parallel",),
            vmem_limit_bytes=32 * 1024 * 1024),
        cost_estimate=cost,
    )(pred2d, gt2d)

    total = jnp.sum(partials)
    return total / jnp.float32(n) if size_average else total


def _reference(pred, gt, *, alpha=ALPHA, gamma=GAMMA, beta=BETA,
               size_average=SIZE_AVERAGE):
    prob = jnp.clip(jax.nn.sigmoid(jnp.reshape(pred, (-1,))), 0.0001, 0.9999)
    gt_idx = jnp.reshape(gt, (-1,)).astype(jnp.int32)
    pt = jnp.where(gt_idx > 0, prob, 1.0 - prob)
    loss = -alpha * jnp.exp(beta - pt ** 2) ** gamma * jnp.log(pt)
    return jnp.mean(loss) if size_average else jnp.sum(loss)


if __name__ == "__main__":
    key = jax.random.PRNGKey(0)
    k1, k2, k3, k4, k5, k6, k7, k8 = jax.random.split(key, 8)

    # detection logits (N, C, H, W) and binary labels of the same shape
    pred = jax.random.normal(k1, (2, 4, 16, 16), dtype=jnp.float32)
    gt = jax.random.bernoulli(k2, 0.3, (2, 4, 16, 16)).astype(jnp.float32)

    loss = jax.block_until_ready(margin_cross_entropy_with_logits(pred, gt))
    ref = _reference(pred, gt)
    assert jnp.allclose(loss, ref, rtol=1e-5, atol=1e-5), (loss, ref)

    # sum reduction (size_average=False)
    loss_sum = jax.block_until_ready(
        margin_cross_entropy_with_logits(pred, gt, size_average=False))
    ref_sum = _reference(pred, gt, size_average=False)
    assert jnp.allclose(loss_sum, ref_sum, rtol=1e-5, atol=1e-3), (
        loss_sum, ref_sum)

    # ragged size, multi-step grid -> padding + last-step-only validity mask
    pred_b = jax.random.normal(k3, (3, 5, 7, 11), dtype=jnp.float32)
    gt_b = jax.random.bernoulli(k4, 0.5, (3, 5, 7, 11)).astype(jnp.float32)
    loss_b = jax.block_until_ready(
        margin_cross_entropy_with_logits(pred_b, gt_b))
    ref_b = _reference(pred_b, gt_b)
    assert jnp.allclose(loss_b, ref_b, rtol=1e-5, atol=1e-5), (loss_b, ref_b)

    # ragged size, single-step grid -> masked single block
    pred_c = jax.random.normal(k5, (10, 100), dtype=jnp.float32)
    gt_c = jax.random.bernoulli(k6, 0.4, (10, 100)).astype(jnp.float32)
    loss_c = jax.block_until_ready(
        margin_cross_entropy_with_logits(pred_c, gt_c))
    ref_c = _reference(pred_c, gt_c)
    assert jnp.allclose(loss_c, ref_c, rtol=1e-5, atol=1e-5), (loss_c, ref_c)

    # larger aligned input -> multi-step parallel grid, no masking
    pred_d = jax.random.normal(k7, (2, 3, 128, 256), dtype=jnp.float32)
    gt_d = jax.random.bernoulli(k8, 0.3, (2, 3, 128, 256)).astype(jnp.float32)
    loss_d = jax.block_until_ready(
        margin_cross_entropy_with_logits(pred_d, gt_d))
    ref_d = _reference(pred_d, gt_d)
    assert jnp.allclose(loss_d, ref_d, rtol=1e-5, atol=1e-5), (loss_d, ref_d)

    print("KERNEL_OK")
</pallas_src>

<mosaic_0001>
module attributes {stable_mosaic.version = 11 : i64} {
  func.func @_margin_ce_kernel(%arg0: i32, %arg1: memref<8x128xf32, #tpu.memory_space<vmem>>, %arg2: memref<8x128xf32, #tpu.memory_space<vmem>>, %arg3: memref<8x128xf32, #tpu.memory_space<vmem>>) attributes {dimension_semantics = [#tpu.dimension_semantics<parallel>], iteration_bounds = array<i64: 2>, scalar_prefetch = 0 : i64, scratch_operands = 0 : i64, tpu.core_type = #tpu.core_type<tc>, window_params = [{transform_indices = @transform_0, window_bounds = array<i64: 8, 128>}, {transform_indices = @transform_1, window_bounds = array<i64: 8, 128>}, {transform_indices = @transform_2, window_bounds = array<i64: 8, 128>}]} {
    %c0 = arith.constant 0 : index
    %c0_0 = arith.constant 0 : index
    %0 = vector.load %arg1[%c0, %c0_0] : memref<8x128xf32, #tpu.memory_space<vmem>>, vector<8x128xf32>
    %cst = arith.constant 5.000000e-01 : f32
    %1 = vector.broadcast %cst : f32 to vector<8x128xf32>
    %2 = arith.mulf %1, %0 : vector<8x128xf32>
    %3 = math.tanh %2 : vector<8x128xf32>
    %cst_1 = arith.constant 5.000000e-01 : f32
    %4 = vector.broadcast %cst_1 : f32 to vector<8x128xf32>
    %5 = arith.mulf %4, %3 : vector<8x128xf32>
    %cst_2 = arith.constant 5.000000e-01 : f32
    %6 = vector.broadcast %cst_2 : f32 to vector<8x128xf32>
    %7 = arith.addf %5, %6 : vector<8x128xf32>
    %cst_3 = arith.constant 9.99999974E-5 : f32
    %cst_4 = arith.constant 0.999899983 : f32
    %8 = vector.broadcast %cst_3 : f32 to vector<8x128xf32>
    %9 = arith.maximumf %8, %7 : vector<8x128xf32>
    %10 = vector.broadcast %cst_4 : f32 to vector<8x128xf32>
    %11 = arith.minimumf %10, %9 : vector<8x128xf32>
    %c0_5 = arith.constant 0 : index
    %c0_6 = arith.constant 0 : index
    %12 = vector.load %arg2[%c0_5, %c0_6] : memref<8x128xf32, #tpu.memory_space<vmem>>, vector<8x128xf32>
    %cst_7 = arith.constant 1.000000e+00 : f32
    %13 = vector.broadcast %cst_7 : f32 to vector<8x128xf32>
    %14 = arith.cmpf oge, %12, %13 : vector<8x128xf32>
    %cst_8 = arith.constant 1.000000e+00 : f32
    %15 = vector.broadcast %cst_8 : f32 to vector<8x128xf32>
    %16 = arith.subf %15, %11 : vector<8x128xf32>
    %17 = arith.select %14, %11, %16 : vector<8x128xi1>, vector<8x128xf32>
    %cst_9 = arith.constant -2.000000e+00 : f32
    %18 = vector.broadcast %cst_9 : f32 to vector<8x128xf32>
    %19 = arith.mulf %18, %17 : vector<8x128xf32>
    %20 = arith.mulf %19, %17 : vector<8x128xf32>
    %21 = math.exp %20 : vector<8x128xf32>
    %cst_10 = arith.constant -2.71828175 : f32
    %22 = vector.broadcast %cst_10 : f32 to vector<8x128xf32>
    %23 = arith.mulf %22, %21 : vector<8x128xf32>
    %24 = math.log %17 : vector<8x128xf32>
    %25 = arith.mulf %23, %24 : vector<8x128xf32>
    %26 = vector.shape_cast %25 : vector<8x128xf32> to vector<1x8x128xf32>
    %cst_11 = arith.constant dense<0.000000e+00> : vector<8x128xf32>
    %27 = vector.multi_reduction <add>, %26, %cst_11 [0] : vector<1x8x128xf32> to vector<8x128xf32>
    %c0_12 = arith.constant 0 : index
    %c0_13 = arith.constant 0 : index
    %28 = vector.load %arg3[%c0_12, %c0_13] : memref<8x128xf32, #tpu.memory_space<vmem>>, vector<8x128xf32>
    tpu.vector_store %arg3[%c0_12, %c0_13], %27 {strides = array<i32>} : memref<8x128xf32, #tpu.memory_space<vmem>>, vector<8x128xf32>,
    return
  }
  func.func @transform_0(%arg0: i32) -> (i32, i32) {
    %c0_i32 = arith.constant 0 : i32
    %c0_i32_0 = arith.constant 0 : i32
    return %arg0, %c0_i32 : i32, i32
  }
  func.func @transform_1(%arg0: i32) -> (i32, i32) {
    %c0_i32 = arith.constant 0 : i32
    %c0_i32_0 = arith.constant 0 : i32
    return %arg0, %c0_i32 : i32, i32
  }
  func.func @transform_2(%arg0: i32) -> (i32, i32) {
    %c0_i32 = arith.constant 0 : i32
    %c0_i32_0 = arith.constant 0 : i32
    return %arg0, %c0_i32 : i32, i32
  }
}

</mosaic_0001>

<llo_original>
// kernel: tpu_custom_call.1
$region0: #{tpu_custom_call.1}
  #allocation0 [shape = 'u32[]', space=smem, size = 0x4, offset = 0x4, fixed_abs, tag = 'smem constant byte address 0x4 - core index']
  #allocation1 [shape = 'u32[144,128]{1,0:T(1,128)}', space=vmem, size = 0x12000, scoped, tag = 'internal scratch']
  %s0 = inlined_call_operand.hbm [shape: f32[16,128], index: 0, kind: input, shape index: {}]
  %s1 = inlined_call_operand.hbm [shape: f32[16,128], index: 1, kind: input, shape index: {}]
  %s2 = inlined_call_operand.hbm [shape: f32[16,128], index: 2, kind: output, shape index: {}]
  %s3 = sld [smem:[#allocation0]]
  $region49: #{tpu_custom_call.1} parent=0
    _
  %s5 = ssub.s32 1, %s3
  %s6 = scalar_select 0, %s5, %s3
  $region1: #{tpu_custom_call.1} parent=0
    #allocation2 [shape = 'u8[8192]{0}', space=vmem, size = 0x2000, scoped, tag = 'input window, operand 0']
    #allocation3 [shape = 's32[2]{0}', space=sflag, size = 0x8, scoped, tag = 'scoped memory for tpu_custom_call.1']
    #allocation4 [shape = 's32[2]{0}', space=sflag, size = 0x8, scoped, tag = 'scoped memory for tpu_custom_call.1']
    #allocation5 [shape = 'u8[8192]{0}', space=vmem, size = 0x2000, scoped, tag = 'input window, operand 1']
    #allocation6 [shape = 's32[2]{0}', space=sflag, size = 0x8, scoped, tag = 'scoped memory for tpu_custom_call.1']
    #allocation7 [shape = 'u8[8192]{0}', space=vmem, size = 0x2000, scoped, tag = 'output window, operand 0']
    %7 = vsyncpa [#allocation3], 0
    %s8 = scalar_lea.sflag [#allocation3], 1
    %9 = vsyncpa %s8, 0
    %10 = vsyncpa [#allocation6], 0
    %s11 = scalar_lea.sflag [#allocation6], 1
    %12 = vsyncpa %s11, 0
    %13 = vsyncpa [#allocation4], 0
    %s14 = scalar_lea.sflag [#allocation4], 1
    %15 = vsyncpa %s14, 0
    loop: start=0, step=1, limit=4
    $region2: #{tpu_custom_call.1} parent=1 // loop_pre_header
      _
    $region3: #{tpu_custom_call.1} parent=1 // loop_header
      %s17 = sphi 0, %s21
      %p18 = scmp.ge.s32.totalorder %s17, 4
      %s27 = sphi 0, %s29
      %s30 = sphi 0, %s27
      %s31 = sphi 0, %s30
      %s47 = sphi 0, %s31
      %s53 = sphi 0, %s55
      %s56 = sphi 0, %s53
      %s57 = sphi 0, %s56
      %s73 = sphi 0, %s57
      %s79 = sphi 0, %s81
      %s82 = sphi 0, %s79
      %s83 = sphi 0, %s82
      %s99 = sphi 0, %s83
    $region4: #{tpu_custom_call.1} parent=1 // loop_header_branch
      %20 = sbr.rel (%p18) target = $region8
    $region5: #{tpu_custom_call.1} parent=1 // loop_body
      %s22 = ssub.s32 %s17, 1
      %s23 = ssub.s32 %s17, 2
      %s24 = sadd.s32 %s17, 1
      %s25 = ssub.s32 %s17, %s24
      %p26 = scmp.eq.s32.totalorder %s25, 0
      %s28 = sadd.s32 %s27, 1
      %s29 = scalar_select %p26, %s27, %s28
      %p32 = pneg %p26
      %p33 = scmp.eq.s32.totalorder %s17, 1
      %p34 = por %p32, %p33
      %p35 = scmp.ne.s32.totalorder %s27, %s30
      %p36 = scmp.eq.s32.totalorder %s17, 0
      %p37 = por %p35, %p36
      %p38 = scmp.ne.s32.totalorder %s27, %s30
      %p39 = scmp.eq.s32.totalorder %s22, 1
      %p40 = por %p38, %p39
      %p41 = scmp.ne.s32.totalorder %s30, %s31
      %p42 = scmp.eq.s32.totalorder %s22, 0
      %p43 = por %p41, %p42
      %p44 = scmp.ne.s32.totalorder %s30, %s31
      %p45 = scmp.eq.s32.totalorder %s23, 1
      %p46 = por %p44, %p45
      %p48 = scmp.ne.s32.totalorder %s31, %s47
      %p49 = scmp.eq.s32.totalorder %s23, 0
      %p50 = por %p48, %p49
      %s51 = ssub.s32 %s17, %s24
      %p52 = scmp.eq.s32.totalorder %s51, 0
      %s54 = sadd.s32 %s53, 1
      %s55 = scalar_select %p52, %s53, %s54
      %p58 = pneg %p52
      %p59 = scmp.eq.s32.totalorder %s17, 1
      %p60 = por %p58, %p59
      %p61 = scmp.ne.s32.totalorder %s53, %s56
      %p62 = scmp.eq.s32.totalorder %s17, 0
      %p63 = por %p61, %p62
      %p64 = scmp.ne.s32.totalorder %s53, %s56
      %p65 = scmp.eq.s32.totalorder %s22, 1
      %p66 = por %p64, %p65
      %p67 = scmp.ne.s32.totalorder %s56, %s57
      %p68 = scmp.eq.s32.totalorder %s22, 0
      %p69 = por %p67, %p68
      %p70 = scmp.ne.s32.totalorder %s56, %s57
      %p71 = scmp.eq.s32.totalorder %s23, 1
      %p72 = por %p70, %p71
      %p74 = scmp.ne.s32.totalorder %s57, %s73
      %p75 = scmp.eq.s32.totalorder %s23, 0
      %p76 = por %p74, %p75
      %s77 = ssub.s32 %s17, %s24
      %p78 = scmp.eq.s32.totalorder %s77, 0
      %s80 = sadd.s32 %s79, 1
      %s81 = scalar_select %p78, %s79, %s80
      %p84 = pneg %p78
      %p85 = scmp.eq.s32.totalorder %s17, 1
      %p86 = por %p84, %p85
      %p87 = scmp.ne.s32.totalorder %s79, %s82
      %p88 = scmp.eq.s32.totalorder %s17, 0
      %p89 = por %p87, %p88
      %p90 = scmp.ne.s32.totalorder %s79, %s82
      %p91 = scmp.eq.s32.totalorder %s22, 1
      %p92 = por %p90, %p91
      %p93 = scmp.ne.s32.totalorder %s82, %s83
      %p94 = scmp.eq.s32.totalorder %s22, 0
      %p95 = por %p93, %p94
      %p96 = scmp.ne.s32.totalorder %s82, %s83
      %p97 = scmp.eq.s32.totalorder %s23, 1
      %p98 = por %p96, %p97
      %p100 = scmp.ne.s32.totalorder %s83, %s99
      %p101 = scmp.eq.s32.totalorder %s23, 0
      %p102 = por %p100, %p101
      %p103 = scmp.le.s32.totalorder 1, %s17
      %p104 = scmp.lt.s32.totalorder %s17, 3
      %p105 = pnand %p103, %p104
      %p106 = pneg %p105
      // Predicated region
      $region9: #{tpu_custom_call.1} parent=5 // pred_check
        _
      $region10: #{tpu_custom_call.1} parent=5 // pred_check_branch
        %108 = sbr.rel (%p105) target = $region12
      $region11: #{tpu_custom_call.1} parent=5 // pred_region
        %s109 = ssub.s32 %s17, 1
      $region12: #{tpu_custom_call.1} parent=5 // pred_fallthru
        _
      %p110 = scmp.lt.s32.totalorder %s17, 2
      // Predicated region
      $region13: #{tpu_custom_call.1} parent=5 // pred_check
        %p111 = pneg %p110
      $region14: #{tpu_custom_call.1} parent=5 // pred_check_branch
        %113 = sbr.rel (%p111) target = $region16
      $region15: #{tpu_custom_call.1} parent=5 // pred_region
        // Predicated region
        $region17: #{tpu_custom_call.1} parent=15 // pred_check
          %p114 = pneg %p37
        $region18: #{tpu_custom_call.1} parent=15 // pred_check_branch
          %116 = sbr.rel (%p114) target = $region20
        $region19: #{tpu_custom_call.1} parent=15 // pred_region
          %s117 = sand.u32 %s27, 1
          %s118 = scalar_lea.sflag [#allocation3], %s117
          %s119 = sand.u32 %s27, 1
          %s120 = smul.addr %s119, 8
          %s121 = scalar_lea.vmem [#allocation2], %s120
          %s123 = ssub.s32 128, 128
          %124 = vsyncadd %s118, %s123
          %s125 = smul.addr %s17, 128
          %s126 = scalar_lea.hbm %s0, %s125
          %s128 = sshll.u32 %s121, 4
          %s129 = int_to_ptr.vmem [resolvable:$true] %s128
          %131 = dma.hbm_to_vmem [thread:$0]  %s126, 128, %s129, %s118
        $region20: #{tpu_custom_call.1} parent=15 // pred_fallthru
          _
        // Predicated region
        $region21: #{tpu_custom_call.1} parent=15 // pred_check
          %p132 = pneg %p63
        $region22: #{tpu_custom_call.1} parent=15 // pred_check_branch
          %134 = sbr.rel (%p132) target = $region24
        $region23: #{tpu_custom_call.1} parent=15 // pred_region
          %s135 = sand.u32 %s53, 1
          %s136 = scalar_lea.sflag [#allocation6], %s135
          %s137 = sand.u32 %s53, 1
          %s138 = smul.addr %s137, 8
          %s139 = scalar_lea.vmem [#allocation5], %s138
          %s141 = ssub.s32 128, 128
          %142 = vsyncadd %s136, %s141
          %s143 = smul.addr %s17, 128
          %s144 = scalar_lea.hbm %s1, %s143
          %s146 = sshll.u32 %s139, 4
          %s147 = int_to_ptr.vmem [resolvable:$true] %s146
          %149 = dma.hbm_to_vmem [thread:$0]  %s144, 128, %s147, %s136
        $region24: #{tpu_custom_call.1} parent=15 // pred_fallthru
          _
      $region16: #{tpu_custom_call.1} parent=5 // pred_fallthru
        _
      %p150 = scmp.le.s32.totalorder 1, %s17
      %p151 = scmp.lt.s32.totalorder %s17, 3
      %p152 = pnand %p150, %p151
      %p153 = pneg %p152
      // Predicated region
      $region25: #{tpu_custom_call.1} parent=5 // pred_check
        _
      $region26: #{tpu_custom_call.1} parent=5 // pred_check_branch
        %155 = sbr.rel (%p152) target = $region28
      $region27: #{tpu_custom_call.1} parent=5 // pred_region
        %s156 = ssub.s32 %s17, 1
        %s157 = sand.u32 %s30, 1
        %s158 = scalar_lea.sflag [#allocation3], %s157
        %s159 = sand.u32 %s30, 1
        %s160 = smul.addr %s159, 8
        %s161 = scalar_lea.vmem [#allocation2], %s160
        // Predicated region
        $region29: #{tpu_custom_call.1} parent=27 // pred_check
          %p162 = pneg %p43
        $region30: #{tpu_custom_call.1} parent=27 // pred_check_branch
          %164 = sbr.rel (%p162) target = $region32
        $region31: #{tpu_custom_call.1} parent=27 // pred_region
          %165 = dma.done %s158, 128
        $region32: #{tpu_custom_call.1} parent=27 // pred_fallthru
          _
        %s166 = sand.u32 %s56, 1
        %s167 = scalar_lea.sflag [#allocation6], %s166
        %s168 = sand.u32 %s56, 1
        %s169 = smul.addr %s168, 8
        %s170 = scalar_lea.vmem [#allocation5], %s169
        // Predicated region
        $region33: #{tpu_custom_call.1} parent=27 // pred_check
          %p171 = pneg %p69
        $region34: #{tpu_custom_call.1} parent=27 // pred_check_branch
          %173 = sbr.rel (%p171) target = $region36
        $region35: #{tpu_custom_call.1} parent=27 // pred_region
          %174 = dma.done %s167, 128
        $region36: #{tpu_custom_call.1} parent=27 // pred_fallthru
          _
        %s175 = sand.u32 %s30, 1
        %s176 = scalar_lea.sflag [#allocation3], %s175
        %s177 = sand.u32 %s30, 1
        %s178 = smul.addr %s177, 8
        %s179 = scalar_lea.vmem [#allocation2], %s178
        %p180 = pneg %p43
        %p181 = pneg %p40
        %s182 = sand.u32 %s56, 1
        %s183 = scalar_lea.sflag [#allocation6], %s182
        %s184 = sand.u32 %s56, 1
        %s185 = smul.addr %s184, 8
        %s186 = scalar_lea.vmem [#allocation5], %s185
        %p187 = pneg %p69
        %p188 = pneg %p66
        %p189 = pneg %p95
        %p190 = pneg %p92
        %s191 = sand.u32 %s82, 1
        %s192 = scalar_lea.sflag [#allocation4], %s191
        %s193 = sand.u32 %s82, 1
        %s194 = smul.addr %s193, 8
        %s195 = scalar_lea.vmem [#allocation7], %s194
        %v196 = vld [vmem:[%s161] sm:$0xff]
        %v197 = vmul.f32 %v196, 0.5
        %v198 = vtanh.pop %v197
        %v199 = vmul.f32 %v198, 0.5
        %v200 = vadd.f32 %v199, 0.5
        %v201 = vmax.f32 %v200, 0.0001
        %v202 = vmin.f32 %v201, 0.9999
        %v203 = vld [vmem:[%s170] sm:$0xff]
        %vm204 = vcmp.ge.f32.partialorder %v203, 1.0
        %v205 = vsub.f32 1.0, %v202
        %v206 = vsel %vm204, %v202, %v205
        %v207 = vmul.f32 %v206, -2.0
        %v208 = vmul.f32 %v207, %v206
        %v209 = vmul.f32 %v208, 1.442695
        %v210 = vpow.pop %v209
        %v211 = vmul.f32 %v210, -2.7182817
        %v212 = vlog2.pop %v206
        %v213 = vmul.f32 %v212, 0.6931472
        %v214 = vmul.f32 %v211, %v213
        %v215 = vadd.f32 %v214, 0.0
        %216 = vst [vmem:[%s195] sm:$0xff] %v215
        %s217 = sand.u32 %s82, 1
        %s218 = scalar_lea.sflag [#allocation4], %s217
        %s219 = sand.u32 %s82, 1
        %s220 = smul.addr %s219, 8
        %s221 = scalar_lea.vmem [#allocation7], %s220
        // Predicated region
        $region37: #{tpu_custom_call.1} parent=27 // pred_check
          %p222 = pneg %p92
        $region38: #{tpu_custom_call.1} parent=27 // pred_check_branch
          %224 = sbr.rel (%p222) target = $region40
        $region39: #{tpu_custom_call.1} parent=27 // pred_region
          %s226 = ssub.s32 128, 128
          %227 = vsyncadd %s218, %s226
          %s228 = smul.addr %s22, 128
          %s229 = scalar_lea.hbm %s2, %s228
          %s231 = sshll.u32 %s221, 4
          %s232 = int_to_ptr.vmem [resolvable:$true] %s231
          %234 = dma.vmem_to_hbm [thread:$0]  %s232, 128, %s229, %s218
        $region40: #{tpu_custom_call.1} parent=27 // pred_fallthru
          _
      $region28: #{tpu_custom_call.1} parent=5 // pred_fallthru
        _
      %p235 = scmp.le.s32.totalorder 2, %s17
      // Predicated region
      $region41: #{tpu_custom_call.1} parent=5 // pred_check
        %p236 = pneg %p235
      $region42: #{tpu_custom_call.1} parent=5 // pred_check_branch
        %238 = sbr.rel (%p236) target = $region44
      $region43: #{tpu_custom_call.1} parent=5 // pred_region
        %s239 = ssub.s32 %s17, 2
        // Predicated region
        $region45: #{tpu_custom_call.1} parent=43 // pred_check
          %p240 = pneg %p98
        $region46: #{tpu_custom_call.1} parent=43 // pred_check_branch
          %242 = sbr.rel (%p240) target = $region48
        $region47: #{tpu_custom_call.1} parent=43 // pred_region
          %s243 = sand.u32 %s83, 1
          %s244 = scalar_lea.sflag [#allocation4], %s243
          %s245 = sand.u32 %s83, 1
          %s246 = smul.addr %s245, 8
          %s247 = scalar_lea.vmem [#allocation7], %s246
          %248 = dma.done %s244, 128
        $region48: #{tpu_custom_call.1} parent=43 // pred_fallthru
          _
      $region44: #{tpu_custom_call.1} parent=5 // pred_fallthru
        _
    $region6: #{tpu_custom_call.1} parent=1 // loop_footer
      %s21 = sadd.s32 1, %s17
    $region7: #{tpu_custom_call.1} parent=1 // loop_footer_branch
      %16 = sbr.rel target = $region3
    $region8: #{tpu_custom_call.1} parent=1 // loop_exit
      _
    %249 = vsyncpa [#allocation3], 1
    %s250 = scalar_lea.sflag [#allocation3], 1
    %251 = vsyncpa %s250, 1
    %252 = vsyncpa [#allocation6], 1
    %s253 = scalar_lea.sflag [#allocation6], 1
    %254 = vsyncpa %s253, 1
    %255 = vsyncpa [#allocation4], 1
    %s256 = scalar_lea.sflag [#allocation4], 1
    %257 = vsyncpa %s256, 1

</llo_original>
